<compile_context>
chip_gen: v5e
topology: v5e:2x2
jax: 0.10.0
libtpu: 0.0.40
codegen_flags: <defaults>
</compile_context>

<pallas_src>
import jax
import jax.numpy as jnp
from jax.experimental import pallas as pl
from jax.experimental.pallas import tpu as pltpu


def _round_up(n, m):
    return ((n + m - 1) // m) * m


def _two_headed_mlp_kernel(x_ref,
                           w1_ref, b1_ref,
                           w2_ref, b2_ref,
                           w3_ref, b3_ref,
                           wh_ref, bh_ref,
                           o_ref):
    """Trunk (Linear->ReLU x3) + fused, lane-padded heads for one batch tile."""
    cdt = w1_ref.dtype  # compute dtype of the MXU operands (bf16)
    # Layer 1: bf16 operands, f32 accumulate; bias-add / ReLU in f32 (VPU-native).
    h = jnp.dot(x_ref[...].astype(cdt), w1_ref[...],
                preferred_element_type=jnp.float32) + b1_ref[...]
    h = jnp.maximum(h, 0.0).astype(cdt)
    # Layer 2.
    h = jnp.dot(h, w2_ref[...], preferred_element_type=jnp.float32) + b2_ref[...]
    h = jnp.maximum(h, 0.0).astype(cdt)
    # Layer 3.
    h = jnp.dot(h, w3_ref[...], preferred_element_type=jnp.float32) + b3_ref[...]
    h = jnp.maximum(h, 0.0).astype(cdt)
    # Fused heads: one (hidden, out_pad) matmul, out_pad is a multiple of 128,
    # so the store below is a full-lane (unmasked) vst.
    o_ref[...] = (jnp.dot(h, wh_ref[...], preferred_element_type=jnp.float32)
                  + bh_ref[...]).astype(o_ref.dtype)


def pack_params(params, compute_dtype=jnp.bfloat16):
    """One-time parameter packing: fuse + lane-pad the heads, cast weights to bf16.

    Biases stay f32 (bias-add is done in f32 inside the kernel).
    """
    out1 = params["wh1"].shape[1]
    out2 = params["wh2"].shape[1]
    out_pad = _round_up(max(out1 + out2, 1), 128)
    wh = jnp.concatenate([params["wh1"], params["wh2"]], axis=1)
    bh = jnp.concatenate([params["bh1"], params["bh2"]], axis=1)
    wh = jnp.pad(wh, ((0, 0), (0, out_pad - (out1 + out2))))
    bh = jnp.pad(bh, ((0, 0), (0, out_pad - (out1 + out2))))
    return dict(
        w1=params["w1"].astype(compute_dtype), b1=params["b1"].astype(jnp.float32),
        w2=params["w2"].astype(compute_dtype), b2=params["b2"].astype(jnp.float32),
        w3=params["w3"].astype(compute_dtype), b3=params["b3"].astype(jnp.float32),
        wh=wh.astype(compute_dtype), bh=bh.astype(jnp.float32),
    )


def two_headed_mlp(x, packed, out_dims, batch_tile=256):
    """x: (B, input_dim) f32. packed: output of pack_params. out_dims: (out1, out2)."""
    out1, out2 = out_dims
    B, in_dim = x.shape
    out_pad = packed["wh"].shape[1]

    # Batch handling: small batches -> single tile rounded up to the f32 sublane (8);
    # large batches -> fixed batch_tile so x/output DMA pipelines against compute.
    if B <= batch_tile:
        tile_b = max(8, _round_up(B, 8))
    else:
        tile_b = batch_tile
    b_pad = _round_up(B, tile_b)
    if b_pad != B:
        x = jnp.pad(x, ((0, b_pad - B), (0, 0)))

    def resident(shape):
        # Same block index at every grid step -> fetched once, stays VMEM-resident.
        return pl.BlockSpec(shape, lambda i: (0, 0))

    out = pl.pallas_call(
        _two_headed_mlp_kernel,
        out_shape=jax.ShapeDtypeStruct((b_pad, out_pad), jnp.float32),
        grid_spec=pltpu.PrefetchScalarGridSpec(
            num_scalar_prefetch=0,
            grid=(b_pad // tile_b,),
            in_specs=[
                pl.BlockSpec((tile_b, in_dim), lambda i: (i, 0)),
                resident(packed["w1"].shape), resident(packed["b1"].shape),
                resident(packed["w2"].shape), resident(packed["b2"].shape),
                resident(packed["w3"].shape), resident(packed["b3"].shape),
                resident(packed["wh"].shape), resident(packed["bh"].shape),
            ],
            out_specs=pl.BlockSpec((tile_b, out_pad), lambda i: (i, 0)),
        ),
        compiler_params=pltpu.CompilerParams(
            # Batch tiles are independent -> v7x megacore splits them across its 2 TCs.
            dimension_semantics=("parallel",),
        ),
    )(x, packed["w1"], packed["b1"], packed["w2"], packed["b2"],
      packed["w3"], packed["b3"], packed["wh"], packed["bh"])

    out = out[:B]
    return out[:, :out1], out[:, out1:out1 + out2]


def init_params(key, input_dim, out1, out2, hidden=256, dtype=jnp.float32):
    """Deterministic uniform init (PyTorch-Linear-style bound), weights stored (in, out)."""
    keys = jax.random.split(key, 10)

    def linear(kw, kb, fan_in, fan_out):
        bound = 1.0 / jnp.sqrt(float(fan_in))
        w = jax.random.uniform(kw, (fan_in, fan_out), dtype, -bound, bound)
        b = jax.random.uniform(kb, (1, fan_out), dtype, -bound, bound)
        return w, b

    w1, b1 = linear(keys[0], keys[1], input_dim, hidden)
    w2, b2 = linear(keys[2], keys[3], hidden, hidden)
    w3, b3 = linear(keys[4], keys[5], hidden, hidden)
    wh1, bh1 = linear(keys[6], keys[7], hidden, out1)
    wh2, bh2 = linear(keys[8], keys[9], hidden, out2)
    return dict(w1=w1, b1=b1, w2=w2, b2=b2, w3=w3, b3=b3,
                wh1=wh1, bh1=bh1, wh2=wh2, bh2=bh2)


def reference(x, p, compute_dtype=jnp.float32):
    """Plain-JAX reference. compute_dtype=bf16 mimics the kernel's MXU rounding."""
    def lin(h, w, b):
        return jnp.dot(h.astype(compute_dtype), w.astype(compute_dtype),
                       preferred_element_type=jnp.float32) + b.astype(jnp.float32)

    h = jnp.maximum(lin(x, p["w1"], p["b1"]), 0.0)
    h = jnp.maximum(lin(h, p["w2"], p["b2"]), 0.0)
    h = jnp.maximum(lin(h, p["w3"], p["b3"]), 0.0)
    return lin(h, p["wh1"], p["bh1"]), lin(h, p["wh2"], p["bh2"])


if __name__ == "__main__":
    key = jax.random.PRNGKey(0)
    k_x, k_p = jax.random.split(key)

    B, input_dim, hidden = 4, 16, 256
    out_dim_1, out_dim_2 = 6, 6

    x = jax.random.normal(k_x, (B, input_dim), jnp.float32)
    params = init_params(k_p, input_dim, out_dim_1, out_dim_2, hidden)
    packed = pack_params(params, compute_dtype=jnp.bfloat16)

    y1, y2 = two_headed_mlp(x, packed, (out_dim_1, out_dim_2))
    jax.block_until_ready((y1, y2))

    assert y1.shape == (B, out_dim_1) and y2.shape == (B, out_dim_2)

    # Tight check vs. a bf16-emulating JAX reference (same MXU rounding as the kernel).
    r1b, r2b = reference(x, params, compute_dtype=jnp.bfloat16)
    assert jnp.allclose(y1, r1b, atol=2e-3, rtol=2e-3)
    assert jnp.allclose(y2, r2b, atol=2e-3, rtol=2e-3)

    # Looser check vs. the exact f32 (PyTorch-semantics) reference: only bf16 weight /
    # activation rounding separates them.
    r1, r2 = reference(x, params, compute_dtype=jnp.float32)
    assert jnp.allclose(y1, r1, atol=3e-2, rtol=3e-2)
    assert jnp.allclose(y2, r2, atol=3e-2, rtol=3e-2)

    print("KERNEL_OK")
</pallas_src>

<mosaic_0001>
module attributes {stable_mosaic.version = 11 : i64} {
  func.func @_two_headed_mlp_kernel(%arg0: i32, %arg1: memref<8x16xf32, #tpu.memory_space<vmem>>, %arg2: memref<16x256xbf16, #tpu.memory_space<vmem>>, %arg3: memref<1x256xf32, #tpu.memory_space<vmem>>, %arg4: memref<256x256xbf16, #tpu.memory_space<vmem>>, %arg5: memref<1x256xf32, #tpu.memory_space<vmem>>, %arg6: memref<256x256xbf16, #tpu.memory_space<vmem>>, %arg7: memref<1x256xf32, #tpu.memory_space<vmem>>, %arg8: memref<256x128xbf16, #tpu.memory_space<vmem>>, %arg9: memref<1x128xf32, #tpu.memory_space<vmem>>, %arg10: memref<8x128xf32, #tpu.memory_space<vmem>>) attributes {dimension_semantics = [#tpu.dimension_semantics<parallel>], iteration_bounds = array<i64: 1>, scalar_prefetch = 0 : i64, scratch_operands = 0 : i64, tpu.core_type = #tpu.core_type<tc>, window_params = [{transform_indices = @transform_0, window_bounds = array<i64: 8, 16>}, {pipeline_mode = #tpu.pipeline_mode<synchronous>, transform_indices = @transform_1, window_bounds = array<i64: 16, 256>}, {pipeline_mode = #tpu.pipeline_mode<synchronous>, transform_indices = @transform_2, window_bounds = array<i64: 1, 256>}, {pipeline_mode = #tpu.pipeline_mode<synchronous>, transform_indices = @transform_3, window_bounds = array<i64: 256, 256>}, {pipeline_mode = #tpu.pipeline_mode<synchronous>, transform_indices = @transform_4, window_bounds = array<i64: 1, 256>}, {pipeline_mode = #tpu.pipeline_mode<synchronous>, transform_indices = @transform_5, window_bounds = array<i64: 256, 256>}, {pipeline_mode = #tpu.pipeline_mode<synchronous>, transform_indices = @transform_6, window_bounds = array<i64: 1, 256>}, {pipeline_mode = #tpu.pipeline_mode<synchronous>, transform_indices = @transform_7, window_bounds = array<i64: 256, 128>}, {pipeline_mode = #tpu.pipeline_mode<synchronous>, transform_indices = @transform_8, window_bounds = array<i64: 1, 128>}, {transform_indices = @transform_9, window_bounds = array<i64: 8, 128>}]} {
    %c0 = arith.constant 0 : index
    %c0_0 = arith.constant 0 : index
    %0 = vector.load %arg1[%c0, %c0_0] : memref<8x16xf32, #tpu.memory_space<vmem>>, vector<8x16xf32>
    %1 = arith.truncf %0 : vector<8x16xf32> to vector<8x16xbf16>
    %c0_1 = arith.constant 0 : index
    %c0_2 = arith.constant 0 : index
    %2 = vector.load %arg2[%c0_1, %c0_2] : memref<16x256xbf16, #tpu.memory_space<vmem>>, vector<16x256xbf16>
    %cst = arith.constant dense<0.000000e+00> : vector<8x256xf32>
    %3 = tpu.matmul %1, %2, %cst {dimension_numbers = #tpu.dot_dimension_numbers<[1], [0], [0], [1], [0, 0, 1, 1], [], []>} : vector<8x16xbf16>, vector<16x256xbf16>, vector<8x256xf32> -> vector<8x256xf32>
    %c0_3 = arith.constant 0 : index
    %c0_4 = arith.constant 0 : index
    %4 = vector.load %arg3[%c0_3, %c0_4] : memref<1x256xf32, #tpu.memory_space<vmem>>, vector<1x256xf32>
    %5 = vector.broadcast %4 : vector<1x256xf32> to vector<8x256xf32>
    %6 = arith.addf %3, %5 : vector<8x256xf32>
    %cst_5 = arith.constant 0.000000e+00 : f32
    %7 = vector.broadcast %cst_5 : f32 to vector<8x256xf32>
    %8 = arith.maximumf %6, %7 : vector<8x256xf32>
    %9 = arith.truncf %8 : vector<8x256xf32> to vector<8x256xbf16>
    %c0_6 = arith.constant 0 : index
    %c0_7 = arith.constant 0 : index
    %10 = vector.load %arg4[%c0_6, %c0_7] : memref<256x256xbf16, #tpu.memory_space<vmem>>, vector<256x256xbf16>
    %cst_8 = arith.constant dense<0.000000e+00> : vector<8x256xf32>
    %11 = tpu.matmul %9, %10, %cst_8 {dimension_numbers = #tpu.dot_dimension_numbers<[1], [0], [0], [1], [0, 0, 1, 1], [], []>} : vector<8x256xbf16>, vector<256x256xbf16>, vector<8x256xf32> -> vector<8x256xf32>
    %c0_9 = arith.constant 0 : index
    %c0_10 = arith.constant 0 : index
    %12 = vector.load %arg5[%c0_9, %c0_10] : memref<1x256xf32, #tpu.memory_space<vmem>>, vector<1x256xf32>
    %13 = vector.broadcast %12 : vector<1x256xf32> to vector<8x256xf32>
    %14 = arith.addf %11, %13 : vector<8x256xf32>
    %cst_11 = arith.constant 0.000000e+00 : f32
    %15 = vector.broadcast %cst_11 : f32 to vector<8x256xf32>
    %16 = arith.maximumf %14, %15 : vector<8x256xf32>
    %17 = arith.truncf %16 : vector<8x256xf32> to vector<8x256xbf16>
    %c0_12 = arith.constant 0 : index
    %c0_13 = arith.constant 0 : index
    %18 = vector.load %arg6[%c0_12, %c0_13] : memref<256x256xbf16, #tpu.memory_space<vmem>>, vector<256x256xbf16>
    %cst_14 = arith.constant dense<0.000000e+00> : vector<8x256xf32>
    %19 = tpu.matmul %17, %18, %cst_14 {dimension_numbers = #tpu.dot_dimension_numbers<[1], [0], [0], [1], [0, 0, 1, 1], [], []>} : vector<8x256xbf16>, vector<256x256xbf16>, vector<8x256xf32> -> vector<8x256xf32>
    %c0_15 = arith.constant 0 : index
    %c0_16 = arith.constant 0 : index
    %20 = vector.load %arg7[%c0_15, %c0_16] : memref<1x256xf32, #tpu.memory_space<vmem>>, vector<1x256xf32>
    %21 = vector.broadcast %20 : vector<1x256xf32> to vector<8x256xf32>
    %22 = arith.addf %19, %21 : vector<8x256xf32>
    %cst_17 = arith.constant 0.000000e+00 : f32
    %23 = vector.broadcast %cst_17 : f32 to vector<8x256xf32>
    %24 = arith.maximumf %22, %23 : vector<8x256xf32>
    %25 = arith.truncf %24 : vector<8x256xf32> to vector<8x256xbf16>
    %c0_18 = arith.constant 0 : index
    %c0_19 = arith.constant 0 : index
    %26 = vector.load %arg8[%c0_18, %c0_19] : memref<256x128xbf16, #tpu.memory_space<vmem>>, vector<256x128xbf16>
    %cst_20 = arith.constant dense<0.000000e+00> : vector<8x128xf32>
    %27 = tpu.matmul %25, %26, %cst_20 {dimension_numbers = #tpu.dot_dimension_numbers<[1], [0], [0], [1], [0, 0, 1, 1], [], []>} : vector<8x256xbf16>, vector<256x128xbf16>, vector<8x128xf32> -> vector<8x128xf32>
    %c0_21 = arith.constant 0 : index
    %c0_22 = arith.constant 0 : index
    %28 = vector.load %arg9[%c0_21, %c0_22] : memref<1x128xf32, #tpu.memory_space<vmem>>, vector<1x128xf32>
    %29 = vector.broadcast %28 : vector<1x128xf32> to vector<8x128xf32>
    %30 = arith.addf %27, %29 : vector<8x128xf32>
    %c0_23 = arith.constant 0 : index
    %c0_24 = arith.constant 0 : index
    %31 = vector.load %arg10[%c0_23, %c0_24] : memref<8x128xf32, #tpu.memory_space<vmem>>, vector<8x128xf32>
    tpu.vector_store %arg10[%c0_23, %c0_24], %30 {strides = array<i32>} : memref<8x128xf32, #tpu.memory_space<vmem>>, vector<8x128xf32>,
    return
  }
  func.func @transform_0(%arg0: i32) -> (i32, i32) {
    %c0_i32 = arith.constant 0 : i32
    %c0_i32_0 = arith.constant 0 : i32
    return %arg0, %c0_i32 : i32, i32
  }
  func.func @transform_1(%arg0: i32) -> (i32, i32) {
    %c0_i32 = arith.constant 0 : i32
    %c0_i32_0 = arith.constant 0 : i32
    %c0_i32_1 = arith.constant 0 : i32
    return %c0_i32, %c0_i32_0 : i32, i32
  }
  func.func @transform_2(%arg0: i32) -> (i32, i32) {
    %c0_i32 = arith.constant 0 : i32
    %c0_i32_0 = arith.constant 0 : i32
    %c0_i32_1 = arith.constant 0 : i32
    return %c0_i32, %c0_i32_0 : i32, i32
  }
  func.func @transform_3(%arg0: i32) -> (i32, i32) {
    %c0_i32 = arith.constant 0 : i32
    %c0_i32_0 = arith.constant 0 : i32
    %c0_i32_1 = arith.constant 0 : i32
    return %c0_i32, %c0_i32_0 : i32, i32
  }
  func.func @transform_4(%arg0: i32) -> (i32, i32) {
    %c0_i32 = arith.constant 0 : i32
    %c0_i32_0 = arith.constant 0 : i32
    %c0_i32_1 = arith.constant 0 : i32
    return %c0_i32, %c0_i32_0 : i32, i32
  }
  func.func @transform_5(%arg0: i32) -> (i32, i32) {
    %c0_i32 = arith.constant 0 : i32
    %c0_i32_0 = arith.constant 0 : i32
    %c0_i32_1 = arith.constant 0 : i32
    return %c0_i32, %c0_i32_0 : i32, i32
  }
  func.func @transform_6(%arg0: i32) -> (i32, i32) {
    %c0_i32 = arith.constant 0 : i32
    %c0_i32_0 = arith.constant 0 : i32
    %c0_i32_1 = arith.constant 0 : i32
    return %c0_i32, %c0_i32_0 : i32, i32
  }
  func.func @transform_7(%arg0: i32) -> (i32, i32) {
    %c0_i32 = arith.constant 0 : i32
    %c0_i32_0 = arith.constant 0 : i32
    %c0_i32_1 = arith.constant 0 : i32
    return %c0_i32, %c0_i32_0 : i32, i32
  }
  func.func @transform_8(%arg0: i32) -> (i32, i32) {
    %c0_i32 = arith.constant 0 : i32
    %c0_i32_0 = arith.constant 0 : i32
    %c0_i32_1 = arith.constant 0 : i32
    return %c0_i32, %c0_i32_0 : i32, i32
  }
  func.func @transform_9(%arg0: i32) -> (i32, i32) {
    %c0_i32 = arith.constant 0 : i32
    %c0_i32_0 = arith.constant 0 : i32
    return %arg0, %c0_i32 : i32, i32
  }
}

</mosaic_0001>

<llo_original>
// kernel: tpu_custom_call.1
$region0: #{tpu_custom_call.1}
  #allocation0 [shape = 'u32[]', space=smem, size = 0x4, offset = 0x4, fixed_abs, tag = 'smem constant byte address 0x4 - core index']
  #allocation1 [shape = 'u32[72,128]{1,0:T(1,128)}', space=vmem, size = 0x9000, scoped, tag = 'internal scratch']
  %s0 = inlined_call_operand.hbm [shape: f32[8,16], index: 0, kind: input, shape index: {}]
  %s1 = inlined_call_operand.hbm [shape: bf16[16,256], index: 1, kind: input, shape index: {}]
  %s2 = inlined_call_operand.hbm [shape: f32[1,256], index: 2, kind: input, shape index: {}]
  %s3 = inlined_call_operand.hbm [shape: bf16[256,256], index: 3, kind: input, shape index: {}]
  %s4 = inlined_call_operand.vmem [shape: f32[1,256], index: 4, kind: input, shape index: {}]
  %s5 = inlined_call_operand.hbm [shape: bf16[256,256], index: 5, kind: input, shape index: {}]
  %s6 = inlined_call_operand.vmem [shape: f32[1,256], index: 6, kind: input, shape index: {}]
  %s7 = inlined_call_operand.hbm [shape: bf16[256,128], index: 7, kind: input, shape index: {}]
  %s8 = inlined_call_operand.vmem [shape: f32[1,128], index: 8, kind: input, shape index: {}]
  %s9 = inlined_call_operand.hbm [shape: f32[8,128], index: 9, kind: output, shape index: {}]
  %s10 = sld [smem:[#allocation0]]
  $region70: #{tpu_custom_call.1} parent=0
    _
  %s12 = ssub.s32 1, %s10
  %s13 = scalar_select 0, %s12, %s10
  $region1: #{tpu_custom_call.1} parent=0
    #allocation2 [shape = 'u8[4096]{0}', space=vmem, size = 0x1000, scoped, tag = 'input window, operand 0, single buffered']
    #allocation3 [shape = 's32[1]{0}', space=sflag, size = 0x4, scoped, tag = 'scoped memory for tpu_custom_call.1']
    #allocation4 [shape = 's32[1]{0}', space=sflag, size = 0x4, scoped, tag = 'scoped memory for tpu_custom_call.1']
    #allocation5 [shape = 'u8[8192]{0}', space=vmem, size = 0x2000, scoped, tag = 'input window, operand 1, single buffered']
    #allocation6 [shape = 's32[1]{0}', space=sflag, size = 0x4, scoped, tag = 'scoped memory for tpu_custom_call.1']
    #allocation7 [shape = 'u8[1024]{0}', space=vmem, size = 0x400, scoped, tag = 'input window, operand 2, single buffered']
    #allocation8 [shape = 'u8[131072]{0}', space=vmem, size = 0x20000, scoped, tag = 'input window, operand 3, single buffered']
    #allocation9 [shape = 's32[1]{0}', space=sflag, size = 0x4, scoped, tag = 'scoped memory for tpu_custom_call.1']
    #allocation10 [shape = 'u8[131072]{0}', space=vmem, size = 0x20000, scoped, tag = 'input window, operand 5, single buffered']
    #allocation11 [shape = 'u8[65536]{0}', space=vmem, size = 0x10000, scoped, tag = 'input window, operand 7, single buffered']
    #allocation12 [shape = 's32[1]{0}', space=sflag, size = 0x4, scoped, tag = 'scoped memory for tpu_custom_call.1']
    #allocation13 [shape = 'u8[4096]{0}', space=vmem, size = 0x1000, scoped, tag = 'output window, operand 0, single buffered']
    %14 = vsyncpa [#allocation3], 0
    %15 = vsyncpa [#allocation6], 0
    %16 = vsyncpa [#allocation9], 0
    %17 = vsyncpa [#allocation12], 0
    %18 = vsyncpa [#allocation4], 0
    // Predicated region
    $region2: #{tpu_custom_call.1} parent=1 // pred_check
      _
    $region3: #{tpu_custom_call.1} parent=1 // pred_check_branch
      %20 = sbr.rel (0) target = $region5
    $region4: #{tpu_custom_call.1} parent=1 // pred_region
      %22 = vsyncadd [#allocation3], 0
      %s24 = sshll.u32 %s0, 4
      %s25 = int_to_ptr.hbm [resolvable:$true] %s24
      %s26 = sshll.u32 [#allocation2], 4
      %s27 = int_to_ptr.vmem [resolvable:$true] %s26
      %29 = dma.hbm_to_vmem [thread:$0]  %s25, 128, %s27, [#allocation3]
    $region5: #{tpu_custom_call.1} parent=1 // pred_fallthru
      _
    // Predicated region
    $region6: #{tpu_custom_call.1} parent=1 // pred_check
      _
    $region7: #{tpu_custom_call.1} parent=1 // pred_check_branch
      %31 = sbr.rel (0) target = $region9
    $region8: #{tpu_custom_call.1} parent=1 // pred_region
      %33 = vsyncadd [#allocation6], 0
      %s34 = sshll.u32 %s1, 4
      %s35 = int_to_ptr.hbm [resolvable:$true] %s34
      %s36 = sshll.u32 [#allocation5], 4
      %s37 = int_to_ptr.vmem [resolvable:$true] %s36
      %42 = dma.hbm_to_vmem [thread:$0]  %s35, 256, %s37, [#allocation6], 128, 128, 8
    $region9: #{tpu_custom_call.1} parent=1 // pred_fallthru
      _
    // Predicated region
    $region10: #{tpu_custom_call.1} parent=1 // pred_check
      _
    $region11: #{tpu_custom_call.1} parent=1 // pred_check_branch
      %44 = sbr.rel (0) target = $region13
    $region12: #{tpu_custom_call.1} parent=1 // pred_region
      %46 = vsyncadd [#allocation6], 0
      %s48 = sshll.u32 %s2, 4
      %s49 = int_to_ptr.hbm [resolvable:$true] %s48
      %s50 = sshll.u32 [#allocation7], 4
      %s51 = int_to_ptr.vmem [resolvable:$true] %s50
      %53 = dma.hbm_to_vmem [thread:$0]  %s49, 32, %s51, [#allocation6]
    $region13: #{tpu_custom_call.1} parent=1 // pred_fallthru
      _
    // Predicated region
    $region14: #{tpu_custom_call.1} parent=1 // pred_check
      _
    $region15: #{tpu_custom_call.1} parent=1 // pred_check_branch
      %55 = sbr.rel (0) target = $region17
    $region16: #{tpu_custom_call.1} parent=1 // pred_region
      %57 = vsyncadd [#allocation9], 0
      %s58 = sshll.u32 %s3, 4
      %s59 = int_to_ptr.hbm [resolvable:$true] %s58
      %s60 = sshll.u32 [#allocation8], 4
      %s61 = int_to_ptr.vmem [resolvable:$true] %s60
      %66 = dma.hbm_to_vmem [thread:$0]  %s59, 4096, %s61, [#allocation9], 128, 128, 8
    $region17: #{tpu_custom_call.1} parent=1 // pred_fallthru
      _
    // Predicated region
    $region18: #{tpu_custom_call.1} parent=1 // pred_check
      _
    $region19: #{tpu_custom_call.1} parent=1 // pred_check_branch
      %68 = sbr.rel (0) target = $region21
    $region20: #{tpu_custom_call.1} parent=1 // pred_region
      _
    $region21: #{tpu_custom_call.1} parent=1 // pred_fallthru
      _
    // Predicated region
    $region22: #{tpu_custom_call.1} parent=1 // pred_check
      _
    $region23: #{tpu_custom_call.1} parent=1 // pred_check_branch
      %70 = sbr.rel (0) target = $region25
    $region24: #{tpu_custom_call.1} parent=1 // pred_region
      %72 = vsyncadd [#allocation9], 0
      %s73 = sshll.u32 %s5, 4
      %s74 = int_to_ptr.hbm [resolvable:$true] %s73
      %s75 = sshll.u32 [#allocation10], 4
      %s76 = int_to_ptr.vmem [resolvable:$true] %s75
      %81 = dma.hbm_to_vmem [thread:$0]  %s74, 4096, %s76, [#allocation9], 128, 128, 8
    $region25: #{tpu_custom_call.1} parent=1 // pred_fallthru
      _
    // Predicated region
    $region26: #{tpu_custom_call.1} parent=1 // pred_check
      _
    $region27: #{tpu_custom_call.1} parent=1 // pred_check_branch
      %83 = sbr.rel (0) target = $region29
    $region28: #{tpu_custom_call.1} parent=1 // pred_region
      _
    $region29: #{tpu_custom_call.1} parent=1 // pred_fallthru
      _
    // Predicated region
    $region30: #{tpu_custom_call.1} parent=1 // pred_check
      _
    $region31: #{tpu_custom_call.1} parent=1 // pred_check_branch
      %85 = sbr.rel (0) target = $region33
    $region32: #{tpu_custom_call.1} parent=1 // pred_region
      %87 = vsyncadd [#allocation12], 0
      %s88 = sshll.u32 %s7, 4
      %s89 = int_to_ptr.hbm [resolvable:$true] %s88
      %s90 = sshll.u32 [#allocation11], 4
      %s91 = int_to_ptr.vmem [resolvable:$true] %s90
      %96 = dma.hbm_to_vmem [thread:$0]  %s89, 2048, %s91, [#allocation12], 64, 64, 4
    $region33: #{tpu_custom_call.1} parent=1 // pred_fallthru
      _
    // Predicated region
    $region34: #{tpu_custom_call.1} parent=1 // pred_check
      _
    $region35: #{tpu_custom_call.1} parent=1 // pred_check_branch
      %98 = sbr.rel (0) target = $region37
    $region36: #{tpu_custom_call.1} parent=1 // pred_region
      _
    $region37: #{tpu_custom_call.1} parent=1 // pred_fallthru
      _
    // Predicated region
    $region38: #{tpu_custom_call.1} parent=1 // pred_check
      _
    $region39: #{tpu_custom_call.1} parent=1 // pred_check_branch
      %100 = sbr.rel (0) target = $region41
    $region40: #{tpu_custom_call.1} parent=1 // pred_region
      %102 = dma.done [#allocation3], 128
    $region41: #{tpu_custom_call.1} parent=1 // pred_fallthru
      _
    // Predicated region
    $region42: #{tpu_custom_call.1} parent=1 // pred_check
      _
    $region43: #{tpu_custom_call.1} parent=1 // pred_check_branch
      %104 = sbr.rel (0) target = $region45
    $region44: #{tpu_custom_call.1} parent=1 // pred_region
      %106 = dma.done [#allocation6], 256
    $region45: #{tpu_custom_call.1} parent=1 // pred_fallthru
      _
    // Predicated region
    $region46: #{tpu_custom_call.1} parent=1 // pred_check
      _
    $region47: #{tpu_custom_call.1} parent=1 // pred_check_branch
      %108 = sbr.rel (0) target = $region49
    $region48: #{tpu_custom_call.1} parent=1 // pred_region
      %110 = dma.done [#allocation6], 32
    $region49: #{tpu_custom_call.1} parent=1 // pred_fallthru
      _
    // Predicated region
    $region50: #{tpu_custom_call.1} parent=1 // pred_check
      _
    $region51: #{tpu_custom_call.1} parent=1 // pred_check_branch
      %112 = sbr.rel (0) target = $region53
    $region52: #{tpu_custom_call.1} parent=1 // pred_region
      %114 = dma.done [#allocation9], 4096
    $region53: #{tpu_custom_call.1} parent=1 // pred_fallthru
      _
    // Predicated region
    $region54: #{tpu_custom_call.1} parent=1 // pred_check
      _
    $region55: #{tpu_custom_call.1} parent=1 // pred_check_branch
      %116 = sbr.rel (0) target = $region57
    $region56: #{tpu_custom_call.1} parent=1 // pred_region
      %118 = dma.done [#allocation9], 4096
    $region57: #{tpu_custom_call.1} parent=1 // pred_fallthru
      _
    // Predicated region
    $region58: #{tpu_custom_call.1} parent=1 // pred_check
      _
    $region59: #{tpu_custom_call.1} parent=1 // pred_check_branch
      %120 = sbr.rel (0) target = $region61
    $region60: #{tpu_custom_call.1} parent=1 // pred_region
      %122 = dma.done [#allocation12], 2048
    $region61: #{tpu_custom_call.1} parent=1 // pred_fallthru
      _
    %v124 = vld [vmem:[#allocation2] sm:$0xff]
    %v125 = vpack.c.bf16 %v124, %v124
    %v126 = vld [vmem:[#allocation5] sm:$0xff]
    %v127 = vld [vmem:[#allocation5 + $0x8] sm:$0xff]
    %v128 = vld [vmem:[#allocation7] sm:$0x3]
    %v130 = vperm.slane %v128, 0
    %v131 = vperm.slane %v128, 1
    %v136 = vunpack.c.l.b16 %v126
    %v137 = vunpack.c.h.b16 %v126
    %v138 = vunpack.c.l.b16 %v127
    %v139 = vunpack.c.h.b16 %v127
    %v140 = vpack.c.b16 %v138, %v136
    %v141 = vpack.c.b16 %v139, %v137
    %vm144 = vcmask 130048
    %v146 = vsel %vm144, %v125, 0
    %148 = vmatpush.bf16.msra.mxu0 0
    %149 = vmatpush.bf16.msra.mxu0 0
    %150 = vmatpush.bf16.msra.mxu0 0
    %151 = vmatpush.bf16.msra.mxu0 0
    %152 = vmatpush.bf16.msra.mxu0 0
    %153 = vmatpush.bf16.msra.mxu0 0
    %154 = vmatpush.bf16.msra.mxu0 0
    %155 = vmatpush.bf16.msra.mxu0 %v140
    %156 = vmatmul.bf16.gmra.mxu0 %v146
    %v157 = vpop.f32.mrf.mxu0
    %v158 = vadd.f32 %v130, %v157
    %v159 = vpop.f32.mrf.mxu0
    %160 = vdwg.mxu0
    %161 = vmatpush.bf16.msra.mxu0 0
    %162 = vmatpush.bf16.msra.mxu0 0
    %163 = vmatpush.bf16.msra.mxu0 0
    %164 = vmatpush.bf16.msra.mxu0 0
    %165 = vmatpush.bf16.msra.mxu0 0
    %166 = vmatpush.bf16.msra.mxu0 0
    %167 = vmatpush.bf16.msra.mxu0 0
    %168 = vmatpush.bf16.msra.mxu0 %v141
    %169 = vmatmul.bf16.gmra.mxu0 %v146
    %v170 = vpop.f32.mrf.mxu0
    %v171 = vadd.f32 %v131, %v170
    %v172 = vpop.f32.mrf.mxu0
    %173 = vdwg.mxu0
    %v174 = vmax.f32 %v158, 0.0
    %v175 = vmax.f32 %v171, 0.0
    %v176 = vpack.c.bf16 %v174, %v174
    %v177 = vpack.c.bf16 %v175, %v175
    %v178 = vld [vmem:[#allocation8] sm:$0xff]
    %v179 = vld [vmem:[#allocation8 + $0x8] sm:$0xff]
    %v180 = vld [vmem:[#allocation8 + $0x10] sm:$0xff]
    %v181 = vld [vmem:[#allocation8 + $0x18] sm:$0xff]
    %v182 = vld [vmem:[#allocation8 + $0x20] sm:$0xff]
    %v183 = vld [vmem:[#allocation8 + $0x28] sm:$0xff]
    %v184 = vld [vmem:[#allocation8 + $0x30] sm:$0xff]
    %v185 = vld [vmem:[#allocation8 + $0x38] sm:$0xff]
    %v186 = vld [vmem:[#allocation8 + $0x40] sm:$0xff]
    %v187 = vld [vmem:[#allocation8 + $0x48] sm:$0xff]
    %v188 = vld [vmem:[#allocation8 + $0x50] sm:$0xff]
    %v189 = vld [vmem:[#allocation8 + $0x58] sm:$0xff]
    %v190 = vld [vmem:[#allocation8 + $0x60] sm:$0xff]
    %v191 = vld [vmem:[#allocation8 + $0x68] sm:$0xff]
    %v192 = vld [vmem:[#allocation8 + $0x70] sm:$0xff]
    %v193 = vld [vmem:[#allocation8 + $0x78] sm:$0xff]
    %v194 = vld [vmem:[#allocation8 + $0x80] sm:$0xff]
    %v195 = vld [vmem:[#allocation8 + $0x88] sm:$0xff]
    %v196 = vld [vmem:[#allocation8 + $0x90] sm:$0xff]
    %v197 = vld [vmem:[#allocation8 + $0x98] sm:$0xff]
    %v198 = vld [vmem:[#allocation8 + $0xa0] sm:$0xff]
    %v199 = vld [vmem:[#allocation8 + $0xa8] sm:$0xff]
    %v200 = vld [vmem:[#allocation8 + $0xb0] sm:$0xff]
    %v201 = vld [vmem:[#allocation8 + $0xb8] sm:$0xff]
    %v202 = vld [vmem:[#allocation8 + $0xc0] sm:$0xff]
    %v203 = vld [vmem:[#allocation8 + $0xc8] sm:$0xff]
    %v204 = vld [vmem:[#allocation8 + $0xd0] sm:$0xff]
    %v205 = vld [vmem:[#allocation8 + $0xd8] sm:$0xff]
    %v206 = vld [vmem:[#allocation8 + $0xe0] sm:$0xff]
    %v207 = vld [vmem:[#allocation8 + $0xe8] sm:$0xff]
    %v208 = vld [vmem:[#allocation8 + $0xf0] sm:$0xff]
    %v209 = vld [vmem:[#allocation8 + $0xf8] sm:$0xff]
    %v210 = vld [vmem:[%s4] sm:$0x3]
    %v212 = vperm.slane %v210, 0
    %v213 = vperm.slane %v210, 1
    %v248 = vunpack.c.l.b16 %v178
    %v249 = vunpack.c.h.b16 %v178
    %v250 = vunpack.c.l.b16 %v179
    %v251 = vunpack.c.h.b16 %v179
    %v252 = vunpack.c.l.b16 %v180
    %v253 = vunpack.c.h.b16 %v180
    %v254 = vunpack.c.l.b16 %v181
    %v255 = vunpack.c.h.b16 %v181
    %v256 = vunpack.c.l.b16 %v182
    %v257 = vunpack.c.h.b16 %v182
    %v258 = vunpack.c.l.b16 %v183
    %v259 = vunpack.c.h.b16 %v183
    %v260 = vunpack.c.l.b16 %v184
    %v261 = vunpack.c.h.b16 %v184
    %v262 = vunpack.c.l.b16 %v185
    %v263 = vunpack.c.h.b16 %v185
    %v264 = vunpack.c.l.b16 %v186
    %v265 = vunpack.c.h.b16 %v186
    %v266 = vunpack.c.l.b16 %v187
    %v267 = vunpack.c.h.b16 %v187
    %v268 = vunpack.c.l.b16 %v188
    %v269 = vunpack.c.h.b16 %v188
    %v270 = vunpack.c.l.b16 %v189
    %v271 = vunpack.c.h.b16 %v189
    %v272 = vunpack.c.l.b16 %v190
    %v273 = vunpack.c.h.b16 %v190
    %v274 = vunpack.c.l.b16 %v191
    %v275 = vunpack.c.h.b16 %v191
    %v276 = vunpack.c.l.b16 %v192
    %v277 = vunpack.c.h.b16 %v192
    %v278 = vunpack.c.l.b16 %v193
    %v279 = vunpack.c.h.b16 %v193
    %v280 = vunpack.c.l.b16 %v194
    %v281 = vunpack.c.h.b16 %v194
    %v282 = vunpack.c.l.b16 %v195
    %v283 = vunpack.c.h.b16 %v195
    %v284 = vunpack.c.l.b16 %v196
    %v285 = vunpack.c.h.b16 %v196
    %v286 = vunpack.c.l.b16 %v197
    %v287 = vunpack.c.h.b16 %v197
    %v288 = vunpack.c.l.b16 %v198
    %v289 = vunpack.c.h.b16 %v198
    %v290 = vunpack.c.l.b16 %v199
    %v291 = vunpack.c.h.b16 %v199
    %v292 = vunpack.c.l.b16 %v200
    %v293 = vunpack.c.h.b16 %v200
    %v294 = vunpack.c.l.b16 %v201
    %v295 = vunpack.c.h.b16 %v201
    %v296 = vunpack.c.l.b16 %v202
    %v297 = vunpack.c.h.b16 %v202
    %v298 = vunpack.c.l.b16 %v203
    %v299 = vunpack.c.h.b16 %v203
    %v300 = vunpack.c.l.b16 %v204
    %v301 = vunpack.c.h.b16 %v204
    %v302 = vunpack.c.l.b16 %v205
    %v303 = vunpack.c.h.b16 %v205
    %v304 = vunpack.c.l.b16 %v206
    %v305 = vunpack.c.h.b16 %v206
    %v306 = vunpack.c.l.b16 %v207
    %v307 = vunpack.c.h.b16 %v207
    %v308 = vunpack.c.l.b16 %v208
    %v309 = vunpack.c.h.b16 %v208
    %v310 = vunpack.c.l.b16 %v209
    %v311 = vunpack.c.h.b16 %v209
    %v312 = vpack.c.b16 %v250, %v248
    %v313 = vpack.c.b16 %v251, %v249
    %v314 = vpack.c.b16 %v254, %v252
    %v315 = vpack.c.b16 %v255, %v253
    %v316 = vpack.c.b16 %v258, %v256
    %v317 = vpack.c.b16 %v259, %v257
    %v318 = vpack.c.b16 %v262, %v260
    %v319 = vpack.c.b16 %v263, %v261
    %v320 = vpack.c.b16 %v266, %v264
    %v321 = vpack.c.b16 %v267, %v265
    %v322 = vpack.c.b16 %v270, %v268
    %v323 = vpack.c.b16 %v271, %v269
    %v324 = vpack.c.b16 %v274, %v272
    %v325 = vpack.c.b16 %v275, %v273
    %v326 = vpack.c.b16 %v278, %v276
    %v327 = vpack.c.b16 %v279, %v277
    %v328 = vpack.c.b16 %v282, %v280
    %v329 = vpack.c.b16 %v283, %v281
    %v330 = vpack.c.b16 %v286, %v284
    %v331 = vpack.c.b16 %v287, %v285
    %v332 = vpack.c.b16 %v290, %v288
    %v333 = vpack.c.b16 %v291, %v289
    %v334 = vpack.c.b16 %v294, %v292
    %v335 = vpack.c.b16 %v295, %v293
    %v336 = vpack.c.b16 %v298, %v296
    %v337 = vpack.c.b16 %v299, %v297
    %v338 = vpack.c.b16 %v302, %v300
    %v339 = vpack.c.b16 %v303, %v301
    %v340 = vpack.c.b16 %v306, %v304
    %v341 = vpack.c.b16 %v307, %v305
    %v342 = vpack.c.b16 %v310, %v308
    %v343 = vpack.c.b16 %v311, %v309
    %376 = vmatpush.bf16.msra.mxu0 %v326
    %377 = vmatpush.bf16.msra.mxu0 %v324
    %378 = vmatpush.bf16.msra.mxu0 %v322
    %379 = vmatpush.bf16.msra.mxu0 %v320
    %380 = vmatpush.bf16.msra.mxu0 %v318
    %381 = vmatpush.bf16.msra.mxu0 %v316
    %382 = vmatpush.bf16.msra.mxu0 %v314
    %383 = vmatpush.bf16.msra.mxu0 %v312
    %384 = vmatmul.bf16.gmra.mxu0 %v176
    %v385 = vpop.f32.mrf.mxu0
    %v386 = vadd.f32 %v212, %v385
    %v387 = vpop.f32.mrf.mxu0
    %388 = vdwg.mxu0
    %389 = vmatpush.bf16.msra.mxu0 %v342
    %390 = vmatpush.bf16.msra.mxu0 %v340
    %391 = vmatpush.bf16.msra.mxu0 %v338
    %392 = vmatpush.bf16.msra.mxu0 %v336
    %393 = vmatpush.bf16.msra.mxu0 %v334
    %394 = vmatpush.bf16.msra.mxu0 %v332
    %395 = vmatpush.bf16.msra.mxu0 %v330
    %396 = vmatpush.bf16.msra.mxu0 %v328
    %397 = vmatmul.bf16.gmra.mxu0 %v177
    %v398 = vpop.f32.mrf.mxu0
    %v399 = vadd.f32 %v386, %v398
    %v400 = vpop.f32.mrf.mxu0
    %401 = vdwg.mxu0
    %402 = vmatpush.bf16.msra.mxu0 %v327
    %403 = vmatpush.bf16.msra.mxu0 %v325
    %404 = vmatpush.bf16.msra.mxu0 %v323
    %405 = vmatpush.bf16.msra.mxu0 %v321
    %406 = vmatpush.bf16.msra.mxu0 %v319
    %407 = vmatpush.bf16.msra.mxu0 %v317
    %408 = vmatpush.bf16.msra.mxu0 %v315
    %409 = vmatpush.bf16.msra.mxu0 %v313
    %410 = vmatmul.bf16.gmra.mxu0 %v176
    %v411 = vpop.f32.mrf.mxu0
    %v412 = vadd.f32 %v213, %v411
    %v413 = vpop.f32.mrf.mxu0
    %414 = vdwg.mxu0
    %415 = vmatpush.bf16.msra.mxu0 %v343
    %416 = vmatpush.bf16.msra.mxu0 %v341
    %417 = vmatpush.bf16.msra.mxu0 %v339
    %418 = vmatpush.bf16.msra.mxu0 %v337
    %419 = vmatpush.bf16.msra.mxu0 %v335
    %420 = vmatpush.bf16.msra.mxu0 %v333
    %421 = vmatpush.bf16.msra.mxu0 %v331
    %422 = vmatpush.bf16.msra.mxu0 %v329
    %423 = vmatmul.bf16.gmra.mxu0 %v177
    %v424 = vpop.f32.mrf.mxu0
    %v425 = vadd.f32 %v412, %v424
    %v426 = vpop.f32.mrf.mxu0
    %427 = vdwg.mxu0
    %v428 = vmax.f32 %v399, 0.0
    %v429 = vmax.f32 %v425, 0.0
    %v430 = vpack.c.bf16 %v428, %v428
    %v431 = vpack.c.bf16 %v429, %v429
    %v432 = vld [vmem:[#allocation10] sm:$0xff]
    %v433 = vld [vmem:[#allocation10 + $0x8] sm:$0xff]
    %v434 = vld [vmem:[#allocation10 + $0x10] sm:$0xff]
    %v435 = vld [vmem:[#allocation10 + $0x18] sm:$0xff]
    %v436 = vld [vmem:[#allocation10 + $0x20] sm:$0xff]
    %v437 = vld [vmem:[#allocation10 + $0x28] sm:$0xff]
    %v438 = vld [vmem:[#allocation10 + $0x30] sm:$0xff]
    %v439 = vld [vmem:[#allocation10 + $0x38] sm:$0xff]
    %v440 = vld [vmem:[#allocation10 + $0x40] sm:$0xff]
    %v441 = vld [vmem:[#allocation10 + $0x48] sm:$0xff]
    %v442 = vld [vmem:[#allocation10 + $0x50] sm:$0xff]
    %v443 = vld [vmem:[#allocation10 + $0x58] sm:$0xff]
    %v444 = vld [vmem:[#allocation10 + $0x60] sm:$0xff]
    %v445 = vld [vmem:[#allocation10 + $0x68] sm:$0xff]
    %v446 = vld [vmem:[#allocation10 + $0x70] sm:$0xff]
    %v447 = vld [vmem:[#allocation10 + $0x78] sm:$0xff]
    %v448 = vld [vmem:[#allocation10 + $0x80] sm:$0xff]
    %v449 = vld [vmem:[#allocation10 + $0x88] sm:$0xff]
    %v450 = vld [vmem:[#allocation10 + $0x90] sm:$0xff]
    %v451 = vld [vmem:[#allocation10 + $0x98] sm:$0xff]
    %v452 = vld [vmem:[#allocation10 + $0xa0] sm:$0xff]
    %v453 = vld [vmem:[#allocation10 + $0xa8] sm:$0xff]
    %v454 = vld [vmem:[#allocation10 + $0xb0] sm:$0xff]
    %v455 = vld [vmem:[#allocation10 + $0xb8] sm:$0xff]
    %v456 = vld [vmem:[#allocation10 + $0xc0] sm:$0xff]
    %v457 = vld [vmem:[#allocation10 + $0xc8] sm:$0xff]
    %v458 = vld [vmem:[#allocation10 + $0xd0] sm:$0xff]
    %v459 = vld [vmem:[#allocation10 + $0xd8] sm:$0xff]
    %v460 = vld [vmem:[#allocation10 + $0xe0] sm:$0xff]
    %v461 = vld [vmem:[#allocation10 + $0xe8] sm:$0xff]
    %v462 = vld [vmem:[#allocation10 + $0xf0] sm:$0xff]
    %v463 = vld [vmem:[#allocation10 + $0xf8] sm:$0xff]
    %v464 = vld [vmem:[%s6] sm:$0x3]
    %v466 = vperm.slane %v464, 0
    %v467 = vperm.slane %v464, 1
    %v502 = vunpack.c.l.b16 %v432
    %v503 = vunpack.c.h.b16 %v432
    %v504 = vunpack.c.l.b16 %v433
    %v505 = vunpack.c.h.b16 %v433
    %v506 = vunpack.c.l.b16 %v434
    %v507 = vunpack.c.h.b16 %v434
    %v508 = vunpack.c.l.b16 %v435
    %v509 = vunpack.c.h.b16 %v435
    %v510 = vunpack.c.l.b16 %v436
    %v511 = vunpack.c.h.b16 %v436
    %v512 = vunpack.c.l.b16 %v437
    %v513 = vunpack.c.h.b16 %v437
    %v514 = vunpack.c.l.b16 %v438
    %v515 = vunpack.c.h.b16 %v438
    %v516 = vunpack.c.l.b16 %v439
    %v517 = vunpack.c.h.b16 %v439
    %v518 = vunpack.c.l.b16 %v440
    %v519 = vunpack.c.h.b16 %v440
    %v520 = vunpack.c.l.b16 %v441
    %v521 = vunpack.c.h.b16 %v441
    %v522 = vunpack.c.l.b16 %v442
    %v523 = vunpack.c.h.b16 %v442
    %v524 = vunpack.c.l.b16 %v443
    %v525 = vunpack.c.h.b16 %v443
    %v526 = vunpack.c.l.b16 %v444
    %v527 = vunpack.c.h.b16 %v444
    %v528 = vunpack.c.l.b16 %v445
    %v529 = vunpack.c.h.b16 %v445
    %v530 = vunpack.c.l.b16 %v446
    %v531 = vunpack.c.h.b16 %v446
    %v532 = vunpack.c.l.b16 %v447
    %v533 = vunpack.c.h.b16 %v447
    %v534 = vunpack.c.l.b16 %v448
    %v535 = vunpack.c.h.b16 %v448
    %v536 = vunpack.c.l.b16 %v449
    %v537 = vunpack.c.h.b16 %v449
    %v538 = vunpack.c.l.b16 %v450
    %v539 = vunpack.c.h.b16 %v450
    %v540 = vunpack.c.l.b16 %v451
    %v541 = vunpack.c.h.b16 %v451
    %v542 = vunpack.c.l.b16 %v452
    %v543 = vunpack.c.h.b16 %v452
    %v544 = vunpack.c.l.b16 %v453
    %v545 = vunpack.c.h.b16 %v453
    %v546 = vunpack.c.l.b16 %v454
    %v547 = vunpack.c.h.b16 %v454
    %v548 = vunpack.c.l.b16 %v455
    %v549 = vunpack.c.h.b16 %v455
    %v550 = vunpack.c.l.b16 %v456
    %v551 = vunpack.c.h.b16 %v456
    %v552 = vunpack.c.l.b16 %v457
    %v553 = vunpack.c.h.b16 %v457
    %v554 = vunpack.c.l.b16 %v458
    %v555 = vunpack.c.h.b16 %v458
    %v556 = vunpack.c.l.b16 %v459
    %v557 = vunpack.c.h.b16 %v459
    %v558 = vunpack.c.l.b16 %v460
    %v559 = vunpack.c.h.b16 %v460
    %v560 = vunpack.c.l.b16 %v461
    %v561 = vunpack.c.h.b16 %v461
    %v562 = vunpack.c.l.b16 %v462
    %v563 = vunpack.c.h.b16 %v462
    %v564 = vunpack.c.l.b16 %v463
    %v565 = vunpack.c.h.b16 %v463
    %v566 = vpack.c.b16 %v504, %v502
    %v567 = vpack.c.b16 %v505, %v503
    %v568 = vpack.c.b16 %v508, %v506
    %v569 = vpack.c.b16 %v509, %v507
    %v570 = vpack.c.b16 %v512, %v510
    %v571 = vpack.c.b16 %v513, %v511
    %v572 = vpack.c.b16 %v516, %v514
    %v573 = vpack.c.b16 %v517, %v515
    %v574 = vpack.c.b16 %v520, %v518
    %v575 = vpack.c.b16 %v521, %v519
    %v576 = vpack.c.b16 %v524, %v522
    %v577 = vpack.c.b16 %v525, %v523
    %v578 = vpack.c.b16 %v528, %v526
    %v579 = vpack.c.b16 %v529, %v527
    %v580 = vpack.c.b16 %v532, %v530
    %v581 = vpack.c.b16 %v533, %v531
    %v582 = vpack.c.b16 %v536, %v534
    %v583 = vpack.c.b16 %v537, %v535
    %v584 = vpack.c.b16 %v540, %v538
    %v585 = vpack.c.b16 %v541, %v539
    %v586 = vpack.c.b16 %v544, %v542
    %v587 = vpack.c.b16 %v545, %v543
    %v588 = vpack.c.b16 %v548, %v546
    %v589 = vpack.c.b16 %v549, %v547
    %v590 = vpack.c.b16 %v552, %v550
    %v591 = vpack.c.b16 %v553, %v551
    %v592 = vpack.c.b16 %v556, %v554
    %v593 = vpack.c.b16 %v557, %v555
    %v594 = vpack.c.b16 %v560, %v558
    %v595 = vpack.c.b16 %v561, %v559
    %v596 = vpack.c.b16 %v564, %v562
    %v597 = vpack.c.b16 %v565, %v563
    %630 = vmatpush.bf16.msra.mxu0 %v580
    %631 = vmatpush.bf16.msra.mxu0 %v578
    %632 = vmatpush.bf16.msra.mxu0 %v576
    %633 = vmatpush.bf16.msra.mxu0 %v574
    %634 = vmatpush.bf16.msra.mxu0 %v572
    %635 = vmatpush.bf16.msra.mxu0 %v570
    %636 = vmatpush.bf16.msra.mxu0 %v568
    %637 = vmatpush.bf16.msra.mxu0 %v566
    %638 = vmatmul.bf16.gmra.mxu0 %v430
    %v639 = vpop.f32.mrf.mxu0
    %v640 = vadd.f32 %v466, %v639
    %v641 = vpop.f32.mrf.mxu0
    %642 = vdwg.mxu0
    %643 = vmatpush.bf16.msra.mxu0 %v596
    %644 = vmatpush.bf16.msra.mxu0 %v594
    %645 = vmatpush.bf16.msra.mxu0 %v592
    %646 = vmatpush.bf16.msra.mxu0 %v590
    %647 = vmatpush.bf16.msra.mxu0 %v588
    %648 = vmatpush.bf16.msra.mxu0 %v586
    %649 = vmatpush.bf16.msra.mxu0 %v584
    %650 = vmatpush.bf16.msra.mxu0 %v582
    %651 = vmatmul.bf16.gmra.mxu0 %v431
    %v652 = vpop.f32.mrf.mxu0
    %v653 = vadd.f32 %v640, %v652
    %v654 = vpop.f32.mrf.mxu0
    %655 = vdwg.mxu0
    %656 = vmatpush.bf16.msra.mxu0 %v581
    %657 = vmatpush.bf16.msra.mxu0 %v579
    %658 = vmatpush.bf16.msra.mxu0 %v577
    %659 = vmatpush.bf16.msra.mxu0 %v575
    %660 = vmatpush.bf16.msra.mxu0 %v573
    %661 = vmatpush.bf16.msra.mxu0 %v571
    %662 = vmatpush.bf16.msra.mxu0 %v569
    %663 = vmatpush.bf16.msra.mxu0 %v567
    %664 = vmatmul.bf16.gmra.mxu0 %v430
    %v665 = vpop.f32.mrf.mxu0
    %v666 = vadd.f32 %v467, %v665
    %v667 = vpop.f32.mrf.mxu0
    %668 = vdwg.mxu0
    %669 = vmatpush.bf16.msra.mxu0 %v597
    %670 = vmatpush.bf16.msra.mxu0 %v595
    %671 = vmatpush.bf16.msra.mxu0 %v593
    %672 = vmatpush.bf16.msra.mxu0 %v591
    %673 = vmatpush.bf16.msra.mxu0 %v589
    %674 = vmatpush.bf16.msra.mxu0 %v587
    %675 = vmatpush.bf16.msra.mxu0 %v585
    %676 = vmatpush.bf16.msra.mxu0 %v583
    %677 = vmatmul.bf16.gmra.mxu0 %v431
    %v678 = vpop.f32.mrf.mxu0
    %v679 = vadd.f32 %v666, %v678
    %v680 = vpop.f32.mrf.mxu0
    %681 = vdwg.mxu0
    %v682 = vmax.f32 %v653, 0.0
    %v683 = vmax.f32 %v679, 0.0
    %v684 = vpack.c.bf16 %v682, %v682
    %v685 = vpack.c.bf16 %v683, %v683
    %v686 = vld [vmem:[#allocation11] sm:$0xf]
    %v687 = vld [vmem:[#allocation11 + $0x4] sm:$0xf]
    %v688 = vld [vmem:[#allocation11 + $0x8] sm:$0xf]
    %v689 = vld [vmem:[#allocation11 + $0xc] sm:$0xf]
    %v690 = vld [vmem:[#allocation11 + $0x10] sm:$0xf]
    %v691 = vld [vmem:[#allocation11 + $0x14] sm:$0xf]
    %v692 = vld [vmem:[#allocation11 + $0x18] sm:$0xf]
    %v693 = vld [vmem:[#allocation11 + $0x1c] sm:$0xf]
    %v694 = vld [vmem:[#allocation11 + $0x20] sm:$0xf]
    %v695 = vld [vmem:[#allocation11 + $0x24] sm:$0xf]
    %v696 = vld [vmem:[#allocation11 + $0x28] sm:$0xf]
    %v697 = vld [vmem:[#allocation11 + $0x2c] sm:$0xf]
    %v698 = vld [vmem:[#allocation11 + $0x30] sm:$0xf]
    %v699 = vld [vmem:[#allocation11 + $0x34] sm:$0xf]
    %v700 = vld [vmem:[#allocation11 + $0x38] sm:$0xf]
    %v701 = vld [vmem:[#allocation11 + $0x3c] sm:$0xf]
    %v702 = vld [vmem:[#allocation11 + $0x40] sm:$0xf]
    %v703 = vld [vmem:[#allocation11 + $0x44] sm:$0xf]
    %v704 = vld [vmem:[#allocation11 + $0x48] sm:$0xf]
    %v705 = vld [vmem:[#allocation11 + $0x4c] sm:$0xf]
    %v706 = vld [vmem:[#allocation11 + $0x50] sm:$0xf]
    %v707 = vld [vmem:[#allocation11 + $0x54] sm:$0xf]
    %v708 = vld [vmem:[#allocation11 + $0x58] sm:$0xf]
    %v709 = vld [vmem:[#allocation11 + $0x5c] sm:$0xf]
    %v710 = vld [vmem:[#allocation11 + $0x60] sm:$0xf]
    %v711 = vld [vmem:[#allocation11 + $0x64] sm:$0xf]
    %v712 = vld [vmem:[#allocation11 + $0x68] sm:$0xf]
    %v713 = vld [vmem:[#allocation11 + $0x6c] sm:$0xf]
    %v714 = vld [vmem:[#allocation11 + $0x70] sm:$0xf]
    %v715 = vld [vmem:[#allocation11 + $0x74] sm:$0xf]
    %v716 = vld [vmem:[#allocation11 + $0x78] sm:$0xf]
    %v717 = vld [vmem:[#allocation11 + $0x7c] sm:$0xf]
    %v718 = vld [vmem:[%s8] sm:$0x1]
    %v720 = vperm.slane %v718, 0
    %v754 = vunpack.c.l.b16 %v686
    %v755 = vunpack.c.l.b16 %v687
    %v756 = vunpack.c.l.b16 %v688
    %v757 = vunpack.c.l.b16 %v689
    %v758 = vunpack.c.l.b16 %v690
    %v759 = vunpack.c.l.b16 %v691
    %v760 = vunpack.c.l.b16 %v692
    %v761 = vunpack.c.l.b16 %v693
    %v762 = vunpack.c.l.b16 %v694
    %v763 = vunpack.c.l.b16 %v695
    %v764 = vunpack.c.l.b16 %v696
    %v765 = vunpack.c.l.b16 %v697
    %v766 = vunpack.c.l.b16 %v698
    %v767 = vunpack.c.l.b16 %v699
    %v768 = vunpack.c.l.b16 %v700
    %v769 = vunpack.c.l.b16 %v701
    %v770 = vunpack.c.l.b16 %v702
    %v771 = vunpack.c.l.b16 %v703
    %v772 = vunpack.c.l.b16 %v704
    %v773 = vunpack.c.l.b16 %v705
    %v774 = vunpack.c.l.b16 %v706
    %v775 = vunpack.c.l.b16 %v707
    %v776 = vunpack.c.l.b16 %v708
    %v777 = vunpack.c.l.b16 %v709
    %v778 = vunpack.c.l.b16 %v710
    %v779 = vunpack.c.l.b16 %v711
    %v780 = vunpack.c.l.b16 %v712
    %v781 = vunpack.c.l.b16 %v713
    %v782 = vunpack.c.l.b16 %v714
    %v783 = vunpack.c.l.b16 %v715
    %v784 = vunpack.c.l.b16 %v716
    %v785 = vunpack.c.l.b16 %v717
    %v786 = vpack.c.b16 %v755, %v754
    %v787 = vpack.c.b16 %v757, %v756
    %v788 = vpack.c.b16 %v759, %v758
    %v789 = vpack.c.b16 %v761, %v760
    %v790 = vpack.c.b16 %v763, %v762
    %v791 = vpack.c.b16 %v765, %v764
    %v792 = vpack.c.b16 %v767, %v766
    %v793 = vpack.c.b16 %v769, %v768
    %v794 = vpack.c.b16 %v771, %v770
    %v795 = vpack.c.b16 %v773, %v772
    %v796 = vpack.c.b16 %v775, %v774
    %v797 = vpack.c.b16 %v777, %v776
    %v798 = vpack.c.b16 %v779, %v778
    %v799 = vpack.c.b16 %v781, %v780
    %v800 = vpack.c.b16 %v783, %v782
    %v801 = vpack.c.b16 %v785, %v784
    %818 = vmatpush.bf16.msra.mxu0 %v793
    %819 = vmatpush.bf16.msra.mxu0 %v792
    %820 = vmatpush.bf16.msra.mxu0 %v791
    %821 = vmatpush.bf16.msra.mxu0 %v790
    %822 = vmatpush.bf16.msra.mxu0 %v789
    %823 = vmatpush.bf16.msra.mxu0 %v788
    %824 = vmatpush.bf16.msra.mxu0 %v787
    %825 = vmatpush.bf16.msra.mxu0 %v786
    %826 = vmatmul.bf16.gmra.mxu0 %v684
    %v827 = vpop.f32.mrf.mxu0
    %v828 = vadd.f32 %v720, %v827
    %v829 = vpop.f32.mrf.mxu0
    %830 = vdwg.mxu0
    %831 = vmatpush.bf16.msra.mxu0 %v801
    %832 = vmatpush.bf16.msra.mxu0 %v800
    %833 = vmatpush.bf16.msra.mxu0 %v799
    %834 = vmatpush.bf16.msra.mxu0 %v798
    %835 = vmatpush.bf16.msra.mxu0 %v797
    %836 = vmatpush.bf16.msra.mxu0 %v796
    %837 = vmatpush.bf16.msra.mxu0 %v795
    %838 = vmatpush.bf16.msra.mxu0 %v794
    %839 = vmatmul.bf16.gmra.mxu0 %v685
    %v840 = vpop.f32.mrf.mxu0
    %v841 = vadd.f32 %v828, %v840
    %v842 = vpop.f32.mrf.mxu0
    %843 = vdwg.mxu0
    %844 = vst [vmem:[#allocation13] sm:$0xff] %v841
    // Predicated region
    $region62: #{tpu_custom_call.1} parent=1 // pred_check
      _
    $region63: #{tpu_custom_call.1} parent=1 // pred_check_branch
      %846 = sbr.rel (0) target = $region65
    $region64: #{tpu_custom_call.1} parent=1 // pred_region
      %848 = vsyncadd [#allocation4], 0
      %s850 = sshll.u32 [#allocation13], 4
      %s851 = int_to_ptr.vmem [resolvable:$true] %s850
      %s852 = sshll.u32 %s9, 4
      %s853 = int_to_ptr.hbm [resolvable:$true] %s852
      %855 = dma.vmem_to_hbm [thread:$0]  %s851, 128, %s853, [#allocation4]
    $region65: #{tpu_custom_call.1} parent=1 // pred_fallthru
      _
    // Predicated region
    $region66: #{tpu_custom_call.1} parent=1 // pred_check
      _
    $region67: #{tpu_custom_call.1} parent=1 // pred_check_branch
      %857 = sbr.rel (0) target = $region69
    $region68: #{tpu_custom_call.1} parent=1 // pred_region
      %859 = dma.done [#allocation4], 128
    $region69: #{tpu_custom_call.1} parent=1 // pred_fallthru
      _
    %860 = vsyncpa [#allocation3], 1
    %861 = vsyncpa [#allocation6], 1
    %862 = vsyncpa [#allocation9], 1
    %863 = vsyncpa [#allocation12], 1
    %864 = vsyncpa [#allocation4], 1

</llo_original>
